<compile_context>
chip_gen: v7x
topology: tpu7x:2x2x1
jax: 0.10.0
libtpu: 0.0.40
codegen_flags: <defaults>
</compile_context>

<pallas_src>
import functools

import jax
import jax.numpy as jnp
from jax.experimental import pallas as pl
from jax.experimental.pallas import tpu as pltpu

_DROP_RATE = 0.3
_LEAKY_SLOPE = 0.2


def _leaky_relu(x, slope=_LEAKY_SLOPE):
    return jnp.where(x > 0, x, slope * x)


def _dropout_select(x, bits):
    # Keep element iff bits >= rate * 2^32  (keep prob = 1 - rate).
    # The 1/(1-rate) inverted-dropout scale is pre-folded into the next
    # layer's weights, so this is a single compare + select.
    thr = jnp.uint32(int(_DROP_RATE * (1 << 32)))
    return jnp.where(bits >= thr, x, 0.0)


def disc_kernel(x_ref,
                w1_ref, b1_ref, w2_ref, b2_ref, w3_ref, b3_ref,
                w4_ref, b4_ref, w5_ref, b5_ref,
                m1_ref, m2_ref, m3_ref, m4_ref,
                out_ref):
    x = x_ref[...].astype(jnp.float32)

    # fc1 -> leaky_relu(0.2) -> dropout(0.3)
    h = jnp.dot(x, w1_ref[...], preferred_element_type=jnp.float32) + b1_ref[...]
    h = _dropout_select(_leaky_relu(h), m1_ref[...])

    # fc2 -> leaky_relu -> dropout
    h = jnp.dot(h, w2_ref[...], preferred_element_type=jnp.float32) + b2_ref[...]
    h = _dropout_select(_leaky_relu(h), m2_ref[...])

    # fc3 -> leaky_relu -> dropout
    h = jnp.dot(h, w3_ref[...], preferred_element_type=jnp.float32) + b3_ref[...]
    h = _dropout_select(_leaky_relu(h), m3_ref[...])

    # fc4 -> leaky_relu   (this is z_d, emitted pre-dropout)
    z_d = _leaky_relu(
        jnp.dot(h, w4_ref[...], preferred_element_type=jnp.float32) + b4_ref[...])

    # dropout(z_d) -> fc5 (zero-padded to 64 output lanes, logit in lane 0)
    hd = _dropout_select(z_d, m4_ref[...])
    logit = jnp.dot(hd, w5_ref[...], preferred_element_type=jnp.float32) + b5_ref[...]
    prob = jax.nn.sigmoid(logit)

    # Pack z_d (lanes 0..63) and sigmoid(fc5) (lanes 64..127, lane 64 valid)
    # into one lane-dense (B, 128) slab -> single unmasked store.
    out_ref[...] = jnp.concatenate([z_d, prob], axis=-1).astype(out_ref.dtype)


def init_params(key, input_dim):
    """PyTorch-Linear-style init: U(-1/sqrt(fan_in), 1/sqrt(fan_in)).
    Weights stored as [in, out] (transposed vs. torch's [out, in])."""
    dims = [input_dim, 512, 256, 128, 64, 1]
    params = []
    for i in range(5):
        fan_in, fan_out = dims[i], dims[i + 1]
        key, kw, kb = jax.random.split(key, 3)
        bound = 1.0 / (fan_in ** 0.5)
        w = jax.random.uniform(kw, (fan_in, fan_out), jnp.float32, -bound, bound)
        b = jax.random.uniform(kb, (1, fan_out), jnp.float32, -bound, bound)
        params += [w, b]
    return tuple(params)


def prepare_params(params):
    """One-time constant transform:
      * fold the inverted-dropout scale 1/(1-p) into W2, W3, W4 (dropout after
        fc1/fc2/fc3) and into W5 (dropout applied to z_d before fc5),
      * zero-pad fc5 from [64,1] -> [64,64] (and b5 -> [1,64]) so the kernel
        output is lane-dense."""
    w1, b1, w2, b2, w3, b3, w4, b4, w5, b5 = params
    s = 1.0 / (1.0 - _DROP_RATE)
    w2 = w2 * s
    w3 = w3 * s
    w4 = w4 * s
    w5 = w5 * s
    w5p = jnp.zeros((w5.shape[0], 64), jnp.float32).at[:, :1].set(w5)
    b5p = jnp.zeros((1, 64), jnp.float32).at[:, :1].set(b5)
    return (w1, b1, w2, b2, w3, b3, w4, b4, w5p, b5p)


@jax.jit
def _disc_call(x, prepared_params, m1, m2, m3, m4):
    B = x.shape[0]
    vmem = pl.BlockSpec(memory_space=pltpu.MemorySpace.VMEM)
    packed = pl.pallas_call(
        disc_kernel,
        out_shape=jax.ShapeDtypeStruct((B, 128), jnp.float32),
        in_specs=[vmem] * 15,
        out_specs=vmem,
    )(x, *prepared_params, m1, m2, m3, m4)
    z_d = packed[:, :64]
    prob = packed[:, 64:65]
    return z_d, prob


def discriminator_forward(x, prepared_params, key):
    """Returns (z_d, sigmoid(fc5(dropout(z_d)))) exactly like the torch module
    (training-mode dropout).  `key` drives the dropout mask bits."""
    B = x.shape[0]
    k1, k2, k3, k4 = jax.random.split(key, 4)
    m1 = jax.random.bits(k1, (B, 512), jnp.uint32)
    m2 = jax.random.bits(k2, (B, 256), jnp.uint32)
    m3 = jax.random.bits(k3, (B, 128), jnp.uint32)
    m4 = jax.random.bits(k4, (B, 64), jnp.uint32)
    return _disc_call(x, prepared_params, m1, m2, m3, m4)


if __name__ == "__main__":
    key = jax.random.PRNGKey(0)
    k_param, k_x, k_drop = jax.random.split(key, 3)

    input_dim = 32
    batch = 8

    params = init_params(k_param, input_dim)
    prepared = prepare_params(params)
    x = jax.random.normal(k_x, (batch, input_dim), dtype=jnp.float32)

    z_d, prob = discriminator_forward(x, prepared, k_drop)
    jax.block_until_ready((z_d, prob))

    assert z_d.shape == (batch, 64)
    assert prob.shape == (batch, 1)
    assert bool(jnp.all(jnp.isfinite(z_d)))
    assert bool(jnp.all((prob >= 0.0) & (prob <= 1.0)))

    print("KERNEL_OK")
</pallas_src>

<mosaic_0001>
module attributes {stable_mosaic.version = 11 : i64} {
  func.func @disc_kernel(%arg0: memref<8x32xf32, #tpu.memory_space<vmem>>, %arg1: memref<32x512xf32, #tpu.memory_space<vmem>>, %arg2: memref<1x512xf32, #tpu.memory_space<vmem>>, %arg3: memref<512x256xf32, #tpu.memory_space<vmem>>, %arg4: memref<1x256xf32, #tpu.memory_space<vmem>>, %arg5: memref<256x128xf32, #tpu.memory_space<vmem>>, %arg6: memref<1x128xf32, #tpu.memory_space<vmem>>, %arg7: memref<128x64xf32, #tpu.memory_space<vmem>>, %arg8: memref<1x64xf32, #tpu.memory_space<vmem>>, %arg9: memref<64x64xf32, #tpu.memory_space<vmem>>, %arg10: memref<1x64xf32, #tpu.memory_space<vmem>>, %arg11: memref<8x512xi32, #tpu.memory_space<vmem>>, %arg12: memref<8x256xi32, #tpu.memory_space<vmem>>, %arg13: memref<8x128xi32, #tpu.memory_space<vmem>>, %arg14: memref<8x64xi32, #tpu.memory_space<vmem>>, %arg15: memref<8x128xf32, #tpu.memory_space<vmem>>) attributes {dimension_semantics = [], scalar_prefetch = 0 : i64, scratch_operands = 0 : i64, tpu.core_type = #tpu.core_type<tc>} {
    %c0 = arith.constant 0 : index
    %c0_0 = arith.constant 0 : index
    %0 = vector.load %arg0[%c0, %c0_0] : memref<8x32xf32, #tpu.memory_space<vmem>>, vector<8x32xf32>
    %c0_1 = arith.constant 0 : index
    %c0_2 = arith.constant 0 : index
    %1 = vector.load %arg1[%c0_1, %c0_2] : memref<32x512xf32, #tpu.memory_space<vmem>>, vector<32x512xf32>
    %cst = arith.constant dense<0.000000e+00> : vector<8x512xf32>
    %2 = tpu.matmul %0, %1, %cst {dimension_numbers = #tpu.dot_dimension_numbers<[1], [0], [0], [1], [0, 0, 1, 1], [], []>} : vector<8x32xf32>, vector<32x512xf32>, vector<8x512xf32> -> vector<8x512xf32>
    %c0_3 = arith.constant 0 : index
    %c0_4 = arith.constant 0 : index
    %3 = vector.load %arg2[%c0_3, %c0_4] : memref<1x512xf32, #tpu.memory_space<vmem>>, vector<1x512xf32>
    %4 = vector.broadcast %3 : vector<1x512xf32> to vector<8x512xf32>
    %5 = arith.addf %2, %4 : vector<8x512xf32>
    %cst_5 = arith.constant 0.000000e+00 : f32
    %6 = vector.broadcast %cst_5 : f32 to vector<8x512xf32>
    %7 = arith.cmpf ogt, %5, %6 : vector<8x512xf32>
    %cst_6 = arith.constant 2.000000e-01 : f32
    %8 = vector.broadcast %cst_6 : f32 to vector<8x512xf32>
    %9 = arith.mulf %8, %5 : vector<8x512xf32>
    %10 = arith.select %7, %5, %9 : vector<8x512xi1>, vector<8x512xf32>
    %c0_7 = arith.constant 0 : index
    %c0_8 = arith.constant 0 : index
    %11 = vector.load %arg11[%c0_7, %c0_8] : memref<8x512xi32, #tpu.memory_space<vmem>>, vector<8x512xi32>
    %c1288490188_i32 = arith.constant 1288490188 : i32
    %12 = vector.broadcast %c1288490188_i32 : i32 to vector<8x512xi32>
    %13 = arith.cmpi uge, %11, %12 : vector<8x512xi32>
    %cst_9 = arith.constant 0.000000e+00 : f32
    %14 = vector.broadcast %cst_9 : f32 to vector<8x512xf32>
    %15 = arith.select %13, %10, %14 : vector<8x512xi1>, vector<8x512xf32>
    %c0_10 = arith.constant 0 : index
    %c0_11 = arith.constant 0 : index
    %16 = vector.load %arg3[%c0_10, %c0_11] : memref<512x256xf32, #tpu.memory_space<vmem>>, vector<512x256xf32>
    %cst_12 = arith.constant dense<0.000000e+00> : vector<8x256xf32>
    %17 = tpu.matmul %15, %16, %cst_12 {dimension_numbers = #tpu.dot_dimension_numbers<[1], [0], [0], [1], [0, 0, 1, 1], [], []>} : vector<8x512xf32>, vector<512x256xf32>, vector<8x256xf32> -> vector<8x256xf32>
    %c0_13 = arith.constant 0 : index
    %c0_14 = arith.constant 0 : index
    %18 = vector.load %arg4[%c0_13, %c0_14] : memref<1x256xf32, #tpu.memory_space<vmem>>, vector<1x256xf32>
    %19 = vector.broadcast %18 : vector<1x256xf32> to vector<8x256xf32>
    %20 = arith.addf %17, %19 : vector<8x256xf32>
    %cst_15 = arith.constant 0.000000e+00 : f32
    %21 = vector.broadcast %cst_15 : f32 to vector<8x256xf32>
    %22 = arith.cmpf ogt, %20, %21 : vector<8x256xf32>
    %cst_16 = arith.constant 2.000000e-01 : f32
    %23 = vector.broadcast %cst_16 : f32 to vector<8x256xf32>
    %24 = arith.mulf %23, %20 : vector<8x256xf32>
    %25 = arith.select %22, %20, %24 : vector<8x256xi1>, vector<8x256xf32>
    %c0_17 = arith.constant 0 : index
    %c0_18 = arith.constant 0 : index
    %26 = vector.load %arg12[%c0_17, %c0_18] : memref<8x256xi32, #tpu.memory_space<vmem>>, vector<8x256xi32>
    %c1288490188_i32_19 = arith.constant 1288490188 : i32
    %27 = vector.broadcast %c1288490188_i32_19 : i32 to vector<8x256xi32>
    %28 = arith.cmpi uge, %26, %27 : vector<8x256xi32>
    %cst_20 = arith.constant 0.000000e+00 : f32
    %29 = vector.broadcast %cst_20 : f32 to vector<8x256xf32>
    %30 = arith.select %28, %25, %29 : vector<8x256xi1>, vector<8x256xf32>
    %c0_21 = arith.constant 0 : index
    %c0_22 = arith.constant 0 : index
    %31 = vector.load %arg5[%c0_21, %c0_22] : memref<256x128xf32, #tpu.memory_space<vmem>>, vector<256x128xf32>
    %cst_23 = arith.constant dense<0.000000e+00> : vector<8x128xf32>
    %32 = tpu.matmul %30, %31, %cst_23 {dimension_numbers = #tpu.dot_dimension_numbers<[1], [0], [0], [1], [0, 0, 1, 1], [], []>} : vector<8x256xf32>, vector<256x128xf32>, vector<8x128xf32> -> vector<8x128xf32>
    %c0_24 = arith.constant 0 : index
    %c0_25 = arith.constant 0 : index
    %33 = vector.load %arg6[%c0_24, %c0_25] : memref<1x128xf32, #tpu.memory_space<vmem>>, vector<1x128xf32>
    %34 = vector.broadcast %33 : vector<1x128xf32> to vector<8x128xf32>
    %35 = arith.addf %32, %34 : vector<8x128xf32>
    %cst_26 = arith.constant 0.000000e+00 : f32
    %36 = vector.broadcast %cst_26 : f32 to vector<8x128xf32>
    %37 = arith.cmpf ogt, %35, %36 : vector<8x128xf32>
    %cst_27 = arith.constant 2.000000e-01 : f32
    %38 = vector.broadcast %cst_27 : f32 to vector<8x128xf32>
    %39 = arith.mulf %38, %35 : vector<8x128xf32>
    %40 = arith.select %37, %35, %39 : vector<8x128xi1>, vector<8x128xf32>
    %c0_28 = arith.constant 0 : index
    %c0_29 = arith.constant 0 : index
    %41 = vector.load %arg13[%c0_28, %c0_29] : memref<8x128xi32, #tpu.memory_space<vmem>>, vector<8x128xi32>
    %c1288490188_i32_30 = arith.constant 1288490188 : i32
    %42 = vector.broadcast %c1288490188_i32_30 : i32 to vector<8x128xi32>
    %43 = arith.cmpi uge, %41, %42 : vector<8x128xi32>
    %cst_31 = arith.constant 0.000000e+00 : f32
    %44 = vector.broadcast %cst_31 : f32 to vector<8x128xf32>
    %45 = arith.select %43, %40, %44 : vector<8x128xi1>, vector<8x128xf32>
    %c0_32 = arith.constant 0 : index
    %c0_33 = arith.constant 0 : index
    %46 = vector.load %arg7[%c0_32, %c0_33] : memref<128x64xf32, #tpu.memory_space<vmem>>, vector<128x64xf32>
    %cst_34 = arith.constant dense<0.000000e+00> : vector<8x64xf32>
    %47 = tpu.matmul %45, %46, %cst_34 {dimension_numbers = #tpu.dot_dimension_numbers<[1], [0], [0], [1], [0, 0, 1, 1], [], []>} : vector<8x128xf32>, vector<128x64xf32>, vector<8x64xf32> -> vector<8x64xf32>
    %c0_35 = arith.constant 0 : index
    %c0_36 = arith.constant 0 : index
    %48 = vector.load %arg8[%c0_35, %c0_36] : memref<1x64xf32, #tpu.memory_space<vmem>>, vector<1x64xf32>
    %49 = vector.broadcast %48 : vector<1x64xf32> to vector<8x64xf32>
    %50 = arith.addf %47, %49 : vector<8x64xf32>
    %cst_37 = arith.constant 0.000000e+00 : f32
    %51 = vector.broadcast %cst_37 : f32 to vector<8x64xf32>
    %52 = arith.cmpf ogt, %50, %51 : vector<8x64xf32>
    %cst_38 = arith.constant 2.000000e-01 : f32
    %53 = vector.broadcast %cst_38 : f32 to vector<8x64xf32>
    %54 = arith.mulf %53, %50 : vector<8x64xf32>
    %55 = arith.select %52, %50, %54 : vector<8x64xi1>, vector<8x64xf32>
    %c0_39 = arith.constant 0 : index
    %c0_40 = arith.constant 0 : index
    %56 = vector.load %arg14[%c0_39, %c0_40] : memref<8x64xi32, #tpu.memory_space<vmem>>, vector<8x64xi32>
    %c1288490188_i32_41 = arith.constant 1288490188 : i32
    %57 = vector.broadcast %c1288490188_i32_41 : i32 to vector<8x64xi32>
    %58 = arith.cmpi uge, %56, %57 : vector<8x64xi32>
    %cst_42 = arith.constant 0.000000e+00 : f32
    %59 = vector.broadcast %cst_42 : f32 to vector<8x64xf32>
    %60 = arith.select %58, %55, %59 : vector<8x64xi1>, vector<8x64xf32>
    %c0_43 = arith.constant 0 : index
    %c0_44 = arith.constant 0 : index
    %61 = vector.load %arg9[%c0_43, %c0_44] : memref<64x64xf32, #tpu.memory_space<vmem>>, vector<64x64xf32>
    %cst_45 = arith.constant dense<0.000000e+00> : vector<8x64xf32>
    %62 = tpu.matmul %60, %61, %cst_45 {dimension_numbers = #tpu.dot_dimension_numbers<[1], [0], [0], [1], [0, 0, 1, 1], [], []>} : vector<8x64xf32>, vector<64x64xf32>, vector<8x64xf32> -> vector<8x64xf32>
    %c0_46 = arith.constant 0 : index
    %c0_47 = arith.constant 0 : index
    %63 = vector.load %arg10[%c0_46, %c0_47] : memref<1x64xf32, #tpu.memory_space<vmem>>, vector<1x64xf32>
    %64 = vector.broadcast %63 : vector<1x64xf32> to vector<8x64xf32>
    %65 = arith.addf %62, %64 : vector<8x64xf32>
    %66 = arith.negf %65 : vector<8x64xf32>
    %67 = math.exp %66 : vector<8x64xf32>
    %cst_48 = arith.constant 1.000000e+00 : f32
    %68 = vector.broadcast %cst_48 : f32 to vector<8x64xf32>
    %69 = arith.addf %68, %67 : vector<8x64xf32>
    %70 = arith.divf %68, %69 : vector<8x64xf32>
    %71 = tpu.concatenate %55, %70 in 1 : vector<8x64xf32>, vector<8x64xf32> -> vector<8x128xf32>
    %c0_49 = arith.constant 0 : index
    %c0_50 = arith.constant 0 : index
    %72 = vector.load %arg15[%c0_49, %c0_50] : memref<8x128xf32, #tpu.memory_space<vmem>>, vector<8x128xf32>
    tpu.vector_store %arg15[%c0_49, %c0_50], %71 {strides = array<i32>} : memref<8x128xf32, #tpu.memory_space<vmem>>, vector<8x128xf32>,
    return
  }
}

</mosaic_0001>

<llo_original>
// kernel: _disc_call.1
$region0: #{_disc_call.1}
  #allocation0 [shape = 'u32[]', space=smem, size = 0x4, offset = 0x4, fixed_abs, tag = 'smem constant byte address 0x4 - core index']
  #allocation1 [shape = 'u32[144,128]{1,0:T(1,128)}', space=vmem, size = 0x12000, scoped, tag = 'internal scratch']
  %s0 = inlined_call_operand.hbm [shape: f32[8,32], index: 0, kind: input, shape index: {}]
  %s1 = inlined_call_operand.vmem [shape: f32[32,512], index: 1, kind: input, shape index: {}]
  %s2 = inlined_call_operand.hbm [shape: f32[1,512], index: 2, kind: input, shape index: {}]
  %s3 = inlined_call_operand.hbm [shape: f32[512,256], index: 3, kind: input, shape index: {}]
  %s4 = inlined_call_operand.hbm [shape: f32[1,256], index: 4, kind: input, shape index: {}]
  %s5 = inlined_call_operand.hbm [shape: f32[256,128], index: 5, kind: input, shape index: {}]
  %s6 = inlined_call_operand.vmem [shape: f32[1,128], index: 6, kind: input, shape index: {}]
  %s7 = inlined_call_operand.vmem [shape: f32[128,64], index: 7, kind: input, shape index: {}]
  %s8 = inlined_call_operand.hbm [shape: f32[1,64], index: 8, kind: input, shape index: {}]
  %s9 = inlined_call_operand.vmem [shape: f32[64,64], index: 9, kind: input, shape index: {}]
  %s10 = inlined_call_operand.hbm [shape: f32[1,64], index: 10, kind: input, shape index: {}]
  %s11 = inlined_call_operand.vmem [shape: u32[8,512], index: 11, kind: input, shape index: {}]
  %s12 = inlined_call_operand.hbm [shape: u32[8,256], index: 12, kind: input, shape index: {}]
  %s13 = inlined_call_operand.vmem [shape: u32[8,128], index: 13, kind: input, shape index: {}]
  %s14 = inlined_call_operand.vmem [shape: u32[8,64], index: 14, kind: input, shape index: {}]
  %s15 = inlined_call_operand.vmem [shape: f32[8,128], index: 15, kind: output, shape index: {}]
  %s16 = sld [smem:[#allocation0]]
  $region102: #{_disc_call.1} parent=0
    _
  %s18 = ssub.s32 1, %s16
  %s19 = scalar_select 0, %s18, %s16
  $region1: #{_disc_call.1} parent=0
    #allocation2 [shape = 'u8[4096]{0}', space=vmem, size = 0x1000, scoped, tag = 'input window, operand 0, single buffered']
    #allocation3 [shape = 's32[1]{0}', space=sflag, size = 0x4, scoped, tag = 'scoped memory for _disc_call.1']
    #allocation4 [shape = 'u8[2048]{0}', space=vmem, size = 0x800, scoped, tag = 'input window, operand 2, single buffered']
    #allocation5 [shape = 's32[1]{0}', space=sflag, size = 0x4, scoped, tag = 'scoped memory for _disc_call.1']
    #allocation6 [shape = 'u8[524288]{0}', space=vmem, size = 0x80000, scoped, tag = 'input window, operand 3, single buffered']
    #allocation7 [shape = 'u8[1024]{0}', space=vmem, size = 0x400, scoped, tag = 'input window, operand 4, single buffered']
    #allocation8 [shape = 's32[1]{0}', space=sflag, size = 0x4, scoped, tag = 'scoped memory for _disc_call.1']
    #allocation9 [shape = 'u8[131072]{0}', space=vmem, size = 0x20000, scoped, tag = 'input window, operand 5, single buffered']
    #allocation10 [shape = 'u8[512]{0}', space=vmem, size = 0x400, scoped, tag = 'input window, operand 8, single buffered']
    #allocation11 [shape = 's32[1]{0}', space=sflag, size = 0x4, scoped, tag = 'scoped memory for _disc_call.1']
    #allocation12 [shape = 'u8[512]{0}', space=vmem, size = 0x400, scoped, tag = 'input window, operand 10, single buffered']
    #allocation13 [shape = 'u8[8192]{0}', space=vmem, size = 0x2000, scoped, tag = 'input window, operand 12, single buffered']
    #allocation14 [shape = 's32[1]{0}', space=sflag, size = 0x4, scoped, tag = 'scoped memory for _disc_call.1']
    %20 = vsyncpa [#allocation3], 0
    %21 = vsyncpa [#allocation5], 0
    %22 = vsyncpa [#allocation8], 0
    %23 = vsyncpa [#allocation11], 0
    %24 = vsyncpa [#allocation14], 0
    // Predicated region
    $region2: #{_disc_call.1} parent=1 // pred_check
      _
    $region3: #{_disc_call.1} parent=1 // pred_check_branch
      %26 = sbr.rel (0) target = $region5
    $region4: #{_disc_call.1} parent=1 // pred_region
      %s28 = ssub.s32 128, 128
      %29 = vsyncadd [#allocation3], %s28
      %s31 = sshll.u32 [#allocation2], 4
      %s32 = int_to_ptr.vmem [resolvable:$true] %s31
      %34 = dma.hbm_to_vmem [thread:$0]  %s0, 128, %s32, [#allocation3]
    $region5: #{_disc_call.1} parent=1 // pred_fallthru
      _
    // Predicated region
    $region6: #{_disc_call.1} parent=1 // pred_check
      _
    $region7: #{_disc_call.1} parent=1 // pred_check_branch
      %36 = sbr.rel (0) target = $region9
    $region8: #{_disc_call.1} parent=1 // pred_region
      _
    $region9: #{_disc_call.1} parent=1 // pred_fallthru
      _
    // Predicated region
    $region10: #{_disc_call.1} parent=1 // pred_check
      _
    $region11: #{_disc_call.1} parent=1 // pred_check_branch
      %38 = sbr.rel (0) target = $region13
    $region12: #{_disc_call.1} parent=1 // pred_region
      %s40 = ssub.s32 64, 64
      %41 = vsyncadd [#allocation5], %s40
      %s43 = sshll.u32 [#allocation4], 4
      %s44 = int_to_ptr.vmem [resolvable:$true] %s43
      %46 = dma.hbm_to_vmem [thread:$0]  %s2, 64, %s44, [#allocation5]
    $region13: #{_disc_call.1} parent=1 // pred_fallthru
      _
    // Predicated region
    $region14: #{_disc_call.1} parent=1 // pred_check
      _
    $region15: #{_disc_call.1} parent=1 // pred_check_branch
      %48 = sbr.rel (0) target = $region17
    $region16: #{_disc_call.1} parent=1 // pred_region
      %s50 = ssub.s32 16384, 16384
      %51 = vsyncadd [#allocation5], %s50
      %s52 = sshll.u32 [#allocation6], 4
      %s53 = int_to_ptr.vmem [resolvable:$true] %s52
      %58 = dma.hbm_to_vmem [thread:$0]  %s3, 16384, %s53, [#allocation5], 256, 256, 16
    $region17: #{_disc_call.1} parent=1 // pred_fallthru
      _
    // Predicated region
    $region18: #{_disc_call.1} parent=1 // pred_check
      _
    $region19: #{_disc_call.1} parent=1 // pred_check_branch
      %60 = sbr.rel (0) target = $region21
    $region20: #{_disc_call.1} parent=1 // pred_region
      %s62 = ssub.s32 32, 32
      %63 = vsyncadd [#allocation8], %s62
      %s65 = sshll.u32 [#allocation7], 4
      %s66 = int_to_ptr.vmem [resolvable:$true] %s65
      %68 = dma.hbm_to_vmem [thread:$0]  %s4, 32, %s66, [#allocation8]
    $region21: #{_disc_call.1} parent=1 // pred_fallthru
      _
    // Predicated region
    $region22: #{_disc_call.1} parent=1 // pred_check
      _
    $region23: #{_disc_call.1} parent=1 // pred_check_branch
      %70 = sbr.rel (0) target = $region25
    $region24: #{_disc_call.1} parent=1 // pred_region
      %s72 = ssub.s32 4096, 4096
      %73 = vsyncadd [#allocation8], %s72
      %s74 = sshll.u32 [#allocation9], 4
      %s75 = int_to_ptr.vmem [resolvable:$true] %s74
      %80 = dma.hbm_to_vmem [thread:$0]  %s5, 4096, %s75, [#allocation8], 128, 128, 8
    $region25: #{_disc_call.1} parent=1 // pred_fallthru
      _
    // Predicated region
    $region26: #{_disc_call.1} parent=1 // pred_check
      _
    $region27: #{_disc_call.1} parent=1 // pred_check_branch
      %82 = sbr.rel (0) target = $region29
    $region28: #{_disc_call.1} parent=1 // pred_region
      _
    $region29: #{_disc_call.1} parent=1 // pred_fallthru
      _
    // Predicated region
    $region30: #{_disc_call.1} parent=1 // pred_check
      _
    $region31: #{_disc_call.1} parent=1 // pred_check_branch
      %84 = sbr.rel (0) target = $region33
    $region32: #{_disc_call.1} parent=1 // pred_region
      _
    $region33: #{_disc_call.1} parent=1 // pred_fallthru
      _
    // Predicated region
    $region34: #{_disc_call.1} parent=1 // pred_check
      _
    $region35: #{_disc_call.1} parent=1 // pred_check_branch
      %86 = sbr.rel (0) target = $region37
    $region36: #{_disc_call.1} parent=1 // pred_region
      %s88 = ssub.s32 16, 16
      %89 = vsyncadd [#allocation11], %s88
      %s91 = sshll.u32 [#allocation10], 4
      %s92 = int_to_ptr.vmem [resolvable:$true] %s91
      %94 = dma.hbm_to_vmem [thread:$0]  %s8, 16, %s92, [#allocation11]
    $region37: #{_disc_call.1} parent=1 // pred_fallthru
      _
    // Predicated region
    $region38: #{_disc_call.1} parent=1 // pred_check
      _
    $region39: #{_disc_call.1} parent=1 // pred_check_branch
      %96 = sbr.rel (0) target = $region41
    $region40: #{_disc_call.1} parent=1 // pred_region
      _
    $region41: #{_disc_call.1} parent=1 // pred_fallthru
      _
    // Predicated region
    $region42: #{_disc_call.1} parent=1 // pred_check
      _
    $region43: #{_disc_call.1} parent=1 // pred_check_branch
      %98 = sbr.rel (0) target = $region45
    $region44: #{_disc_call.1} parent=1 // pred_region
      %s100 = ssub.s32 16, 16
      %101 = vsyncadd [#allocation11], %s100
      %s103 = sshll.u32 [#allocation12], 4
      %s104 = int_to_ptr.vmem [resolvable:$true] %s103
      %106 = dma.hbm_to_vmem [thread:$0]  %s10, 16, %s104, [#allocation11]
    $region45: #{_disc_call.1} parent=1 // pred_fallthru
      _
    // Predicated region
    $region46: #{_disc_call.1} parent=1 // pred_check
      _
    $region47: #{_disc_call.1} parent=1 // pred_check_branch
      %108 = sbr.rel (0) target = $region49
    $region48: #{_disc_call.1} parent=1 // pred_region
      _
    $region49: #{_disc_call.1} parent=1 // pred_fallthru
      _
    // Predicated region
    $region50: #{_disc_call.1} parent=1 // pred_check
      _
    $region51: #{_disc_call.1} parent=1 // pred_check_branch
      %110 = sbr.rel (0) target = $region53
    $region52: #{_disc_call.1} parent=1 // pred_region
      %s112 = ssub.s32 256, 256
      %113 = vsyncadd [#allocation14], %s112
      %s115 = sshll.u32 [#allocation13], 4
      %s116 = int_to_ptr.vmem [resolvable:$true] %s115
      %118 = dma.hbm_to_vmem [thread:$0]  %s12, 256, %s116, [#allocation14]
    $region53: #{_disc_call.1} parent=1 // pred_fallthru
      _
    // Predicated region
    $region54: #{_disc_call.1} parent=1 // pred_check
      _
    $region55: #{_disc_call.1} parent=1 // pred_check_branch
      %120 = sbr.rel (0) target = $region57
    $region56: #{_disc_call.1} parent=1 // pred_region
      _
    $region57: #{_disc_call.1} parent=1 // pred_fallthru
      _
    // Predicated region
    $region58: #{_disc_call.1} parent=1 // pred_check
      _
    $region59: #{_disc_call.1} parent=1 // pred_check_branch
      %122 = sbr.rel (0) target = $region61
    $region60: #{_disc_call.1} parent=1 // pred_region
      _
    $region61: #{_disc_call.1} parent=1 // pred_fallthru
      _
    // Predicated region
    $region62: #{_disc_call.1} parent=1 // pred_check
      _
    $region63: #{_disc_call.1} parent=1 // pred_check_branch
      %124 = sbr.rel (0) target = $region65
    $region64: #{_disc_call.1} parent=1 // pred_region
      %125 = dma.done [#allocation3], 128
    $region65: #{_disc_call.1} parent=1 // pred_fallthru
      _
    // Predicated region
    $region66: #{_disc_call.1} parent=1 // pred_check
      _
    $region67: #{_disc_call.1} parent=1 // pred_check_branch
      %127 = sbr.rel (0) target = $region69
    $region68: #{_disc_call.1} parent=1 // pred_region
      %128 = dma.done [#allocation5], 64
    $region69: #{_disc_call.1} parent=1 // pred_fallthru
      _
    // Predicated region
    $region70: #{_disc_call.1} parent=1 // pred_check
      _
    $region71: #{_disc_call.1} parent=1 // pred_check_branch
      %130 = sbr.rel (0) target = $region73
    $region72: #{_disc_call.1} parent=1 // pred_region
      %131 = dma.done [#allocation5], 16384
    $region73: #{_disc_call.1} parent=1 // pred_fallthru
      _
    // Predicated region
    $region74: #{_disc_call.1} parent=1 // pred_check
      _
    $region75: #{_disc_call.1} parent=1 // pred_check_branch
      %133 = sbr.rel (0) target = $region77
    $region76: #{_disc_call.1} parent=1 // pred_region
      %134 = dma.done [#allocation8], 32
    $region77: #{_disc_call.1} parent=1 // pred_fallthru
      _
    // Predicated region
    $region78: #{_disc_call.1} parent=1 // pred_check
      _
    $region79: #{_disc_call.1} parent=1 // pred_check_branch
      %136 = sbr.rel (0) target = $region81
    $region80: #{_disc_call.1} parent=1 // pred_region
      %137 = dma.done [#allocation8], 4096
    $region81: #{_disc_call.1} parent=1 // pred_fallthru
      _
    // Predicated region
    $region82: #{_disc_call.1} parent=1 // pred_check
      _
    $region83: #{_disc_call.1} parent=1 // pred_check_branch
      %139 = sbr.rel (0) target = $region85
    $region84: #{_disc_call.1} parent=1 // pred_region
      %140 = dma.done [#allocation11], 16
    $region85: #{_disc_call.1} parent=1 // pred_fallthru
      _
    // Predicated region
    $region86: #{_disc_call.1} parent=1 // pred_check
      _
    $region87: #{_disc_call.1} parent=1 // pred_check_branch
      %142 = sbr.rel (0) target = $region89
    $region88: #{_disc_call.1} parent=1 // pred_region
      %143 = dma.done [#allocation11], 16
    $region89: #{_disc_call.1} parent=1 // pred_fallthru
      _
    // Predicated region
    $region90: #{_disc_call.1} parent=1 // pred_check
      _
    $region91: #{_disc_call.1} parent=1 // pred_check_branch
      %145 = sbr.rel (0) target = $region93
    $region92: #{_disc_call.1} parent=1 // pred_region
      %146 = dma.done [#allocation14], 256
    $region93: #{_disc_call.1} parent=1 // pred_fallthru
      _
    %v147 = vld [vmem:[#allocation2] sm:$0xff]
    %v148 = vld [vmem:[%s1] sm:$0xff]
    %v149 = vld [vmem:[%s1 + $0x8] sm:$0xff]
    %v150 = vld [vmem:[%s1 + $0x10] sm:$0xff]
    %v151 = vld [vmem:[%s1 + $0x18] sm:$0xff]
    %v152 = vld [vmem:[%s1 + $0x20] sm:$0xff]
    %v153 = vld [vmem:[%s1 + $0x28] sm:$0xff]
    %v154 = vld [vmem:[%s1 + $0x30] sm:$0xff]
    %v155 = vld [vmem:[%s1 + $0x38] sm:$0xff]
    %v156 = vld [vmem:[%s1 + $0x40] sm:$0xff]
    %v157 = vld [vmem:[%s1 + $0x48] sm:$0xff]
    %v158 = vld [vmem:[%s1 + $0x50] sm:$0xff]
    %v159 = vld [vmem:[%s1 + $0x58] sm:$0xff]
    %v160 = vld [vmem:[%s1 + $0x60] sm:$0xff]
    %v161 = vld [vmem:[%s1 + $0x68] sm:$0xff]
    %v162 = vld [vmem:[%s1 + $0x70] sm:$0xff]
    %v163 = vld [vmem:[%s1 + $0x78] sm:$0xff]
    %v164 = vld [vmem:[#allocation4] sm:$0xf]
    %v166 = vlaneseq
    %v167 = vshrl.u32 %v166, 7
    %v168 = vsub.s32 0, %v167
    %v169 = vrot.slane %v164, %v168
    %v170 = vlaneseq
    %v171 = vshrl.u32 %v170, 7
    %v172 = vsub.s32 1, %v171
    %v173 = vrot.slane %v164, %v172
    %v174 = vlaneseq
    %v175 = vshrl.u32 %v174, 7
    %v176 = vsub.s32 2, %v175
    %v177 = vrot.slane %v164, %v176
    %v178 = vlaneseq
    %v179 = vshrl.u32 %v178, 7
    %v180 = vsub.s32 3, %v179
    %v181 = vrot.slane %v164, %v180
    %vm186 = vcmask 261120
    %v188 = vsel %vm186, %v147, 0
    %190 = vmatprep.subr.mxu0 %v149
    %191 = vmatpush1.msra.mxu0 %v148
    %192 = vmatprep.subr.mxu0 %v153
    %193 = vmatpush1.msra.mxu0 %v152
    %194 = vmatprep.subr.mxu0 %v157
    %195 = vmatpush1.msra.mxu0 %v156
    %196 = vmatprep.subr.mxu0 %v161
    %197 = vmatpush1.msra.mxu0 %v160
    %198 = vmatprep.subr.mxu0 0.0
    %199 = vmatpush1.msra.mxu0 0.0
    %200 = vmatprep.subr.mxu0 0.0
    %201 = vmatpush1.msra.mxu0 0.0
    %202 = vmatprep.subr.mxu0 0.0
    %203 = vmatpush1.msra.mxu0 0.0
    %204 = vmatprep.subr.mxu0 0.0
    %205 = vmatpush1.msra.mxu0 0.0
    %206 = vmatprep.subr.mxu0 0.0
    %207 = vmatpush1.msra.mxu0 0.0
    %208 = vmatprep.subr.mxu0 0.0
    %209 = vmatpush1.msra.mxu0 0.0
    %210 = vmatprep.subr.mxu0 0.0
    %211 = vmatpush1.msra.mxu0 0.0
    %212 = vmatprep.subr.mxu0 0.0
    %213 = vmatpush1.msra.mxu0 0.0
    %214 = vmatprep.subr.mxu0 0.0
    %215 = vmatpush1.msra.mxu0 0.0
    %216 = vmatprep.subr.mxu0 0.0
    %217 = vmatpush1.msra.mxu0 0.0
    %218 = vmatprep.subr.mxu0 0.0
    %219 = vmatpush1.msra.mxu0 0.0
    %220 = vmatprep.subr.mxu0 0.0
    %221 = vmatpush1.msra.mxu0 0.0
    %222 = vmatprep.subr.mxu0 0.0
    %223 = vmatpush1.msra.mxu0 0.0
    %224 = vmatprep.subr.mxu0 0.0
    %225 = vmatpush1.msra.mxu0 0.0
    %226 = vmatprep.subr.mxu0 0.0
    %227 = vmatpush1.msra.mxu0 0.0
    %228 = vmatprep.subr.mxu0 0.0
    %229 = vmatpush1.msra.mxu0 0.0
    %230 = vmatprep.subr.mxu0 0.0
    %231 = vmatpush1.msra.mxu0 0.0
    %232 = vmatprep.subr.mxu0 0.0
    %233 = vmatpush1.msra.mxu0 0.0
    %234 = vmatprep.subr.mxu0 0.0
    %235 = vmatpush1.msra.mxu0 0.0
    %236 = vmatprep.subr.mxu0 0.0
    %237 = vmatpush1.msra.mxu0 0.0
    %238 = vmatprep.subr.mxu0 0.0
    %239 = vmatpush1.msra.mxu0 0.0
    %240 = vmatprep.subr.mxu0 0.0
    %241 = vmatpush1.msra.mxu0 0.0
    %242 = vmatprep.subr.mxu0 0.0
    %243 = vmatpush1.msra.mxu0 0.0
    %244 = vmatprep.subr.mxu0 0.0
    %245 = vmatpush1.msra.mxu0 0.0
    %246 = vmatprep.subr.mxu0 0.0
    %247 = vmatpush1.msra.mxu0 0.0
    %248 = vmatprep.subr.mxu0 0.0
    %249 = vmatpush1.msra.mxu0 0.0
    %250 = vmatprep.subr.mxu0 0.0
    %251 = vmatpush1.msra.mxu0 0.0
    %252 = vmatprep.subr.mxu0 0.0
    %253 = vmatpush1.msra.mxu0 0.0
    %254 = vmatprep.mubr.f32.mxu0 0.0
    %255 = vmatmul.mubr.f32.gmra.mrb[0].mxu0 %v188
    %v256 = vpop.f32.mrb[0].mxu0
    %v257 = vadd.f32 %v169, %v256
    %v258 = vpop.f32.mrb[0].mxu0
    %v259 = vadd.f32 %v173, %v258
    %260 = vdwg.mxu0
    %261 = vmatprep.subr.mxu0 %v151
    %262 = vmatpush1.msra.mxu0 %v150
    %263 = vmatprep.subr.mxu0 %v155
    %264 = vmatpush1.msra.mxu0 %v154
    %265 = vmatprep.subr.mxu0 %v159
    %266 = vmatpush1.msra.mxu0 %v158
    %267 = vmatprep.subr.mxu0 %v163
    %268 = vmatpush1.msra.mxu0 %v162
    %269 = vmatprep.subr.mxu0 0.0
    %270 = vmatpush1.msra.mxu0 0.0
    %271 = vmatprep.subr.mxu0 0.0
    %272 = vmatpush1.msra.mxu0 0.0
    %273 = vmatprep.subr.mxu0 0.0
    %274 = vmatpush1.msra.mxu0 0.0
    %275 = vmatprep.subr.mxu0 0.0
    %276 = vmatpush1.msra.mxu0 0.0
    %277 = vmatprep.subr.mxu0 0.0
    %278 = vmatpush1.msra.mxu0 0.0
    %279 = vmatprep.subr.mxu0 0.0
    %280 = vmatpush1.msra.mxu0 0.0
    %281 = vmatprep.subr.mxu0 0.0
    %282 = vmatpush1.msra.mxu0 0.0
    %283 = vmatprep.subr.mxu0 0.0
    %284 = vmatpush1.msra.mxu0 0.0
    %285 = vmatprep.subr.mxu0 0.0
    %286 = vmatpush1.msra.mxu0 0.0
    %287 = vmatprep.subr.mxu0 0.0
    %288 = vmatpush1.msra.mxu0 0.0
    %289 = vmatprep.subr.mxu0 0.0
    %290 = vmatpush1.msra.mxu0 0.0
    %291 = vmatprep.subr.mxu0 0.0
    %292 = vmatpush1.msra.mxu0 0.0
    %293 = vmatprep.subr.mxu0 0.0
    %294 = vmatpush1.msra.mxu0 0.0
    %295 = vmatprep.subr.mxu0 0.0
    %296 = vmatpush1.msra.mxu0 0.0
    %297 = vmatprep.subr.mxu0 0.0
    %298 = vmatpush1.msra.mxu0 0.0
    %299 = vmatprep.subr.mxu0 0.0
    %300 = vmatpush1.msra.mxu0 0.0
    %301 = vmatprep.subr.mxu0 0.0
    %302 = vmatpush1.msra.mxu0 0.0
    %303 = vmatprep.subr.mxu0 0.0
    %304 = vmatpush1.msra.mxu0 0.0
    %305 = vmatprep.subr.mxu0 0.0
    %306 = vmatpush1.msra.mxu0 0.0
    %307 = vmatprep.subr.mxu0 0.0
    %308 = vmatpush1.msra.mxu0 0.0
    %309 = vmatprep.subr.mxu0 0.0
    %310 = vmatpush1.msra.mxu0 0.0
    %311 = vmatprep.subr.mxu0 0.0
    %312 = vmatpush1.msra.mxu0 0.0
    %313 = vmatprep.subr.mxu0 0.0
    %314 = vmatpush1.msra.mxu0 0.0
    %315 = vmatprep.subr.mxu0 0.0
    %316 = vmatpush1.msra.mxu0 0.0
    %317 = vmatprep.subr.mxu0 0.0
    %318 = vmatpush1.msra.mxu0 0.0
    %319 = vmatprep.subr.mxu0 0.0
    %320 = vmatpush1.msra.mxu0 0.0
    %321 = vmatprep.subr.mxu0 0.0
    %322 = vmatpush1.msra.mxu0 0.0
    %323 = vmatprep.subr.mxu0 0.0
    %324 = vmatpush1.msra.mxu0 0.0
    %325 = vmatprep.mubr.f32.mxu0 0.0
    %326 = vmatmul.mubr.f32.gmra.mrb[0].mxu0 %v188
    %v327 = vpop.f32.mrb[0].mxu0
    %v328 = vadd.f32 %v177, %v327
    %v329 = vpop.f32.mrb[0].mxu0
    %v330 = vadd.f32 %v181, %v329
    %331 = vdwg.mxu0
    %vm332 = vcmp.gt.f32.partialorder %v257, 0.0
    %vm333 = vcmp.gt.f32.partialorder %v259, 0.0
    %vm334 = vcmp.gt.f32.partialorder %v328, 0.0
    %vm335 = vcmp.gt.f32.partialorder %v330, 0.0
    %v336 = vmul.f32 %v257, 0.2
    %v337 = vmul.f32 %v259, 0.2
    %v338 = vmul.f32 %v328, 0.2
    %v339 = vmul.f32 %v330, 0.2
    %v340 = vsel %vm332, %v257, %v336
    %v341 = vsel %vm333, %v259, %v337
    %v342 = vsel %vm334, %v328, %v338
    %v343 = vsel %vm335, %v330, %v339
    %v344 = vld [vmem:[%s11] sm:$0xff]
    %v345 = vld [vmem:[%s11 + $0x8] sm:$0xff]
    %v346 = vld [vmem:[%s11 + $0x10] sm:$0xff]
    %v347 = vld [vmem:[%s11 + $0x18] sm:$0xff]
    %vm348 = vcmp.ge.u32.totalorder %v344, 1288490188
    %vm349 = vcmp.ge.u32.totalorder %v345, 1288490188
    %vm350 = vcmp.ge.u32.totalorder %v346, 1288490188
    %vm351 = vcmp.ge.u32.totalorder %v347, 1288490188
    %v352 = vsel %vm348, %v340, 0.0
    %v353 = vsel %vm349, %v341, 0.0
    %v354 = vsel %vm350, %v342, 0.0
    %v355 = vsel %vm351, %v343, 0.0
    %v356 = vld [vmem:[#allocation6] sm:$0xff]
    %v357 = vld [vmem:[#allocation6 + $0x8] sm:$0xff]
    %v358 = vld [vmem:[#allocation6 + $0x10] sm:$0xff]
    %v359 = vld [vmem:[#allocation6 + $0x18] sm:$0xff]
    %v360 = vld [vmem:[#allocation6 + $0x20] sm:$0xff]
    %v361 = vld [vmem:[#allocation6 + $0x28] sm:$0xff]
    %v362 = vld [vmem:[#allocation6 + $0x30] sm:$0xff]
    %v363 = vld [vmem:[#allocation6 + $0x38] sm:$0xff]
    %v364 = vld [vmem:[#allocation6 + $0x40] sm:$0xff]
    %v365 = vld [vmem:[#allocation6 + $0x48] sm:$0xff]
    %v366 = vld [vmem:[#allocation6 + $0x50] sm:$0xff]
    %v367 = vld [vmem:[#allocation6 + $0x58] sm:$0xff]
    %v368 = vld [vmem:[#allocation6 + $0x60] sm:$0xff]
    %v369 = vld [vmem:[#allocation6 + $0x68] sm:$0xff]
    %v370 = vld [vmem:[#allocation6 + $0x70] sm:$0xff]
    %v371 = vld [vmem:[#allocation6 + $0x78] sm:$0xff]
    %v372 = vld [vmem:[#allocation6 + $0x80] sm:$0xff]
    %v373 = vld [vmem:[#allocation6 + $0x88] sm:$0xff]
    %v374 = vld [vmem:[#allocation6 + $0x90] sm:$0xff]
    %v375 = vld [vmem:[#allocation6 + $0x98] sm:$0xff]
    %v376 = vld [vmem:[#allocation6 + $0xa0] sm:$0xff]
    %v377 = vld [vmem:[#allocation6 + $0xa8] sm:$0xff]
    %v378 = vld [vmem:[#allocation6 + $0xb0] sm:$0xff]
    %v379 = vld [vmem:[#allocation6 + $0xb8] sm:$0xff]
    %v380 = vld [vmem:[#allocation6 + $0xc0] sm:$0xff]
    %v381 = vld [vmem:[#allocation6 + $0xc8] sm:$0xff]
    %v382 = vld [vmem:[#allocation6 + $0xd0] sm:$0xff]
    %v383 = vld [vmem:[#allocation6 + $0xd8] sm:$0xff]
    %v384 = vld [vmem:[#allocation6 + $0xe0] sm:$0xff]
    %v385 = vld [vmem:[#allocation6 + $0xe8] sm:$0xff]
    %v386 = vld [vmem:[#allocation6 + $0xf0] sm:$0xff]
    %v387 = vld [vmem:[#allocation6 + $0xf8] sm:$0xff]
    %v388 = vld [vmem:[#allocation6 + $0x100] sm:$0xff]
    %v389 = vld [vmem:[#allocation6 + $0x108] sm:$0xff]
    %v390 = vld [vmem:[#allocation6 + $0x110] sm:$0xff]
    %v391 = vld [vmem:[#allocation6 + $0x118] sm:$0xff]
    %v392 = vld [vmem:[#allocation6 + $0x120] sm:$0xff]
    %v393 = vld [vmem:[#allocation6 + $0x128] sm:$0xff]
    %v394 = vld [vmem:[#allocation6 + $0x130] sm:$0xff]
    %v395 = vld [vmem:[#allocation6 + $0x138] sm:$0xff]
    %v396 = vld [vmem:[#allocation6 + $0x140] sm:$0xff]
    %v397 = vld [vmem:[#allocation6 + $0x148] sm:$0xff]
    %v398 = vld [vmem:[#allocation6 + $0x150] sm:$0xff]
    %v399 = vld [vmem:[#allocation6 + $0x158] sm:$0xff]
    %v400 = vld [vmem:[#allocation6 + $0x160] sm:$0xff]
    %v401 = vld [vmem:[#allocation6 + $0x168] sm:$0xff]
    %v402 = vld [vmem:[#allocation6 + $0x170] sm:$0xff]
    %v403 = vld [vmem:[#allocation6 + $0x178] sm:$0xff]
    %v404 = vld [vmem:[#allocation6 + $0x180] sm:$0xff]
    %v405 = vld [vmem:[#allocation6 + $0x188] sm:$0xff]
    %v406 = vld [vmem:[#allocation6 + $0x190] sm:$0xff]
    %v407 = vld [vmem:[#allocation6 + $0x198] sm:$0xff]
    %v408 = vld [vmem:[#allocation6 + $0x1a0] sm:$0xff]
    %v409 = vld [vmem:[#allocation6 + $0x1a8] sm:$0xff]
    %v410 = vld [vmem:[#allocation6 + $0x1b0] sm:$0xff]
    %v411 = vld [vmem:[#allocation6 + $0x1b8] sm:$0xff]
    %v412 = vld [vmem:[#allocation6 + $0x1c0] sm:$0xff]
    %v413 = vld [vmem:[#allocation6 + $0x1c8] sm:$0xff]
    %v414 = vld [vmem:[#allocation6 + $0x1d0] sm:$0xff]
    %v415 = vld [vmem:[#allocation6 + $0x1d8] sm:$0xff]
    %v416 = vld [vmem:[#allocation6 + $0x1e0] sm:$0xff]
    %v417 = vld [vmem:[#allocation6 + $0x1e8] sm:$0xff]
    %v418 = vld [vmem:[#allocation6 + $0x1f0] sm:$0xff]
    %v419 = vld [vmem:[#allocation6 + $0x1f8] sm:$0xff]
    %v420 = vld [vmem:[#allocation6 + $0x200] sm:$0xff]
    %v421 = vld [vmem:[#allocation6 + $0x208] sm:$0xff]
    %v422 = vld [vmem:[#allocation6 + $0x210] sm:$0xff]
    %v423 = vld [vmem:[#allocation6 + $0x218] sm:$0xff]
    %v424 = vld [vmem:[#allocation6 + $0x220] sm:$0xff]
    %v425 = vld [vmem:[#allocation6 + $0x228] sm:$0xff]
    %v426 = vld [vmem:[#allocation6 + $0x230] sm:$0xff]
    %v427 = vld [vmem:[#allocation6 + $0x238] sm:$0xff]
    %v428 = vld [vmem:[#allocation6 + $0x240] sm:$0xff]
    %v429 = vld [vmem:[#allocation6 + $0x248] sm:$0xff]
    %v430 = vld [vmem:[#allocation6 + $0x250] sm:$0xff]
    %v431 = vld [vmem:[#allocation6 + $0x258] sm:$0xff]
    %v432 = vld [vmem:[#allocation6 + $0x260] sm:$0xff]
    %v433 = vld [vmem:[#allocation6 + $0x268] sm:$0xff]
    %v434 = vld [vmem:[#allocation6 + $0x270] sm:$0xff]
    %v435 = vld [vmem:[#allocation6 + $0x278] sm:$0xff]
    %v436 = vld [vmem:[#allocation6 + $0x280] sm:$0xff]
    %v437 = vld [vmem:[#allocation6 + $0x288] sm:$0xff]
    %v438 = vld [vmem:[#allocation6 + $0x290] sm:$0xff]
    %v439 = vld [vmem:[#allocation6 + $0x298] sm:$0xff]
    %v440 = vld [vmem:[#allocation6 + $0x2a0] sm:$0xff]
    %v441 = vld [vmem:[#allocation6 + $0x2a8] sm:$0xff]
    %v442 = vld [vmem:[#allocation6 + $0x2b0] sm:$0xff]
    %v443 = vld [vmem:[#allocation6 + $0x2b8] sm:$0xff]
    %v444 = vld [vmem:[#allocation6 + $0x2c0] sm:$0xff]
    %v445 = vld [vmem:[#allocation6 + $0x2c8] sm:$0xff]
    %v446 = vld [vmem:[#allocation6 + $0x2d0] sm:$0xff]
    %v447 = vld [vmem:[#allocation6 + $0x2d8] sm:$0xff]
    %v448 = vld [vmem:[#allocation6 + $0x2e0] sm:$0xff]
    %v449 = vld [vmem:[#allocation6 + $0x2e8] sm:$0xff]
    %v450 = vld [vmem:[#allocation6 + $0x2f0] sm:$0xff]
    %v451 = vld [vmem:[#allocation6 + $0x2f8] sm:$0xff]
    %v452 = vld [vmem:[#allocation6 + $0x300] sm:$0xff]
    %v453 = vld [vmem:[#allocation6 + $0x308] sm:$0xff]
    %v454 = vld [vmem:[#allocation6 + $0x310] sm:$0xff]
    %v455 = vld [vmem:[#allocation6 + $0x318] sm:$0xff]
    %v456 = vld [vmem:[#allocation6 + $0x320] sm:$0xff]
    %v457 = vld [vmem:[#allocation6 + $0x328] sm:$0xff]
    %v458 = vld [vmem:[#allocation6 + $0x330] sm:$0xff]
    %v459 = vld [vmem:[#allocation6 + $0x338] sm:$0xff]
    %v460 = vld [vmem:[#allocation6 + $0x340] sm:$0xff]
    %v461 = vld [vmem:[#allocation6 + $0x348] sm:$0xff]
    %v462 = vld [vmem:[#allocation6 + $0x350] sm:$0xff]
    %v463 = vld [vmem:[#allocation6 + $0x358] sm:$0xff]
    %v464 = vld [vmem:[#allocation6 + $0x360] sm:$0xff]
    %v465 = vld [vmem:[#allocation6 + $0x368] sm:$0xff]
    %v466 = vld [vmem:[#allocation6 + $0x370] sm:$0xff]
    %v467 = vld [vmem:[#allocation6 + $0x378] sm:$0xff]
    %v468 = vld [vmem:[#allocation6 + $0x380] sm:$0xff]
    %v469 = vld [vmem:[#allocation6 + $0x388] sm:$0xff]
    %v470 = vld [vmem:[#allocation6 + $0x390] sm:$0xff]
    %v471 = vld [vmem:[#allocation6 + $0x398] sm:$0xff]
    %v472 = vld [vmem:[#allocation6 + $0x3a0] sm:$0xff]
    %v473 = vld [vmem:[#allocation6 + $0x3a8] sm:$0xff]
    %v474 = vld [vmem:[#allocation6 + $0x3b0] sm:$0xff]
    %v475 = vld [vmem:[#allocation6 + $0x3b8] sm:$0xff]
    %v476 = vld [vmem:[#allocation6 + $0x3c0] sm:$0xff]
    %v477 = vld [vmem:[#allocation6 + $0x3c8] sm:$0xff]
    %v478 = vld [vmem:[#allocation6 + $0x3d0] sm:$0xff]
    %v479 = vld [vmem:[#allocation6 + $0x3d8] sm:$0xff]
    %v480 = vld [vmem:[#allocation6 + $0x3e0] sm:$0xff]
    %v481 = vld [vmem:[#allocation6 + $0x3e8] sm:$0xff]
    %v482 = vld [vmem:[#allocation6 + $0x3f0] sm:$0xff]
    %v483 = vld [vmem:[#allocation6 + $0x3f8] sm:$0xff]
    %v484 = vld [vmem:[#allocation7] sm:$0x3]
    %v486 = vlaneseq
    %v487 = vshrl.u32 %v486, 7
    %v488 = vsub.s32 0, %v487
    %v489 = vrot.slane %v484, %v488
    %v490 = vlaneseq
    %v491 = vshrl.u32 %v490, 7
    %v492 = vsub.s32 1, %v491
    %v493 = vrot.slane %v484, %v492
    %496 = vmatprep.subr.mxu0 %v357
    %497 = vmatpush1.msra.mxu0 %v356
    %498 = vmatprep.subr.mxu0 %v359
    %499 = vmatpush1.msra.mxu0 %v358
    %500 = vmatprep.subr.mxu0 %v361
    %501 = vmatpush1.msra.mxu0 %v360
    %502 = vmatprep.subr.mxu0 %v363
    %503 = vmatpush1.msra.mxu0 %v362
    %504 = vmatprep.subr.mxu0 %v365
    %505 = vmatpush1.msra.mxu0 %v364
    %506 = vmatprep.subr.mxu0 %v367
    %507 = vmatpush1.msra.mxu0 %v366
    %508 = vmatprep.subr.mxu0 %v369
    %509 = vmatpush1.msra.mxu0 %v368
    %510 = vmatprep.subr.mxu0 %v371
    %511 = vmatpush1.msra.mxu0 %v370
    %512 = vmatprep.subr.mxu0 %v373
    %513 = vmatpush1.msra.mxu0 %v372
    %514 = vmatprep.subr.mxu0 %v375
    %515 = vmatpush1.msra.mxu0 %v374
    %516 = vmatprep.subr.mxu0 %v377
    %517 = vmatpush1.msra.mxu0 %v376
    %518 = vmatprep.subr.mxu0 %v379
    %519 = vmatpush1.msra.mxu0 %v378
    %520 = vmatprep.subr.mxu0 %v381
    %521 = vmatpush1.msra.mxu0 %v380
    %522 = vmatprep.subr.mxu0 %v383
    %523 = vmatpush1.msra.mxu0 %v382
    %524 = vmatprep.subr.mxu0 %v385
    %525 = vmatpush1.msra.mxu0 %v384
    %526 = vmatprep.subr.mxu0 %v387
    %527 = vmatpush1.msra.mxu0 %v386
    %528 = vmatprep.subr.mxu0 %v389
    %529 = vmatpush1.msra.mxu0 %v388
    %530 = vmatprep.subr.mxu0 %v391
    %531 = vmatpush1.msra.mxu0 %v390
    %532 = vmatprep.subr.mxu0 %v393
    %533 = vmatpush1.msra.mxu0 %v392
    %534 = vmatprep.subr.mxu0 %v395
    %535 = vmatpush1.msra.mxu0 %v394
    %536 = vmatprep.subr.mxu0 %v397
    %537 = vmatpush1.msra.mxu0 %v396
    %538 = vmatprep.subr.mxu0 %v399
    %539 = vmatpush1.msra.mxu0 %v398
    %540 = vmatprep.subr.mxu0 %v401
    %541 = vmatpush1.msra.mxu0 %v400
    %542 = vmatprep.subr.mxu0 %v403
    %543 = vmatpush1.msra.mxu0 %v402
    %544 = vmatprep.subr.mxu0 %v405
    %545 = vmatpush1.msra.mxu0 %v404
    %546 = vmatprep.subr.mxu0 %v407
    %547 = vmatpush1.msra.mxu0 %v406
    %548 = vmatprep.subr.mxu0 %v409
    %549 = vmatpush1.msra.mxu0 %v408
    %550 = vmatprep.subr.mxu0 %v411
    %551 = vmatpush1.msra.mxu0 %v410
    %552 = vmatprep.subr.mxu0 %v413
    %553 = vmatpush1.msra.mxu0 %v412
    %554 = vmatprep.subr.mxu0 %v415
    %555 = vmatpush1.msra.mxu0 %v414
    %556 = vmatprep.subr.mxu0 %v417
    %557 = vmatpush1.msra.mxu0 %v416
    %558 = vmatprep.subr.mxu0 %v419
    %559 = vmatpush1.msra.mxu0 %v418
    %560 = vmatprep.mubr.f32.mxu0 %v353
    %561 = vmatmul.mubr.f32.gmra.mrb[0].mxu0 %v352
    %v562 = vpop.f32.mrb[0].mxu0
    %v563 = vadd.f32 %v489, %v562
    %v564 = vpop.f32.mrb[0].mxu0
    %v565 = vadd.f32 %v493, %v564
    %566 = vdwg.mxu0
    %567 = vmatprep.subr.mxu0 %v421
    %568 = vmatpush1.msra.mxu0 %v420
    %569 = vmatprep.subr.mxu0 %v423
    %570 = vmatpush1.msra.mxu0 %v422
    %571 = vmatprep.subr.mxu0 %v425
    %572 = vmatpush1.msra.mxu0 %v424
    %573 = vmatprep.subr.mxu0 %v427
    %574 = vmatpush1.msra.mxu0 %v426
    %575 = vmatprep.subr.mxu0 %v429
    %576 = vmatpush1.msra.mxu0 %v428
    %577 = vmatprep.subr.mxu0 %v431
    %578 = vmatpush1.msra.mxu0 %v430
    %579 = vmatprep.subr.mxu0 %v433
    %580 = vmatpush1.msra.mxu0 %v432
    %581 = vmatprep.subr.mxu0 %v435
    %582 = vmatpush1.msra.mxu0 %v434
    %583 = vmatprep.subr.mxu0 %v437
    %584 = vmatpush1.msra.mxu0 %v436
    %585 = vmatprep.subr.mxu0 %v439
    %586 = vmatpush1.msra.mxu0 %v438
    %587 = vmatprep.subr.mxu0 %v441
    %588 = vmatpush1.msra.mxu0 %v440
    %589 = vmatprep.subr.mxu0 %v443
    %590 = vmatpush1.msra.mxu0 %v442
    %591 = vmatprep.subr.mxu0 %v445
    %592 = vmatpush1.msra.mxu0 %v444
    %593 = vmatprep.subr.mxu0 %v447
    %594 = vmatpush1.msra.mxu0 %v446
    %595 = vmatprep.subr.mxu0 %v449
    %596 = vmatpush1.msra.mxu0 %v448
    %597 = vmatprep.subr.mxu0 %v451
    %598 = vmatpush1.msra.mxu0 %v450
    %599 = vmatprep.subr.mxu0 %v453
    %600 = vmatpush1.msra.mxu0 %v452
    %601 = vmatprep.subr.mxu0 %v455
    %602 = vmatpush1.msra.mxu0 %v454
    %603 = vmatprep.subr.mxu0 %v457
    %604 = vmatpush1.msra.mxu0 %v456
    %605 = vmatprep.subr.mxu0 %v459
    %606 = vmatpush1.msra.mxu0 %v458
    %607 = vmatprep.subr.mxu0 %v461
    %608 = vmatpush1.msra.mxu0 %v460
    %609 = vmatprep.subr.mxu0 %v463
    %610 = vmatpush1.msra.mxu0 %v462
    %611 = vmatprep.subr.mxu0 %v465
    %612 = vmatpush1.msra.mxu0 %v464
    %613 = vmatprep.subr.mxu0 %v467
    %614 = vmatpush1.msra.mxu0 %v466
    %615 = vmatprep.subr.mxu0 %v469
    %616 = vmatpush1.msra.mxu0 %v468
    %617 = vmatprep.subr.mxu0 %v471
    %618 = vmatpush1.msra.mxu0 %v470
    %619 = vmatprep.subr.mxu0 %v473
    %620 = vmatpush1.msra.mxu0 %v472
    %621 = vmatprep.subr.mxu0 %v475
    %622 = vmatpush1.msra.mxu0 %v474
    %623 = vmatprep.subr.mxu0 %v477
    %624 = vmatpush1.msra.mxu0 %v476
    %625 = vmatprep.subr.mxu0 %v479
    %626 = vmatpush1.msra.mxu0 %v478
    %627 = vmatprep.subr.mxu0 %v481
    %628 = vmatpush1.msra.mxu0 %v480
    %629 = vmatprep.subr.mxu0 %v483
    %630 = vmatpush1.msra.mxu0 %v482
    %631 = vmatprep.mubr.f32.mxu0 %v355
    %632 = vmatmul.mubr.f32.gmra.mrb[0].mxu0 %v354
    %v633 = vpop.f32.mrb[0].mxu0
    %v634 = vadd.f32 %v563, %v633
    %v635 = vpop.f32.mrb[0].mxu0
    %v636 = vadd.f32 %v565, %v635
    %637 = vdwg.mxu0
    %vm638 = vcmp.gt.f32.partialorder %v634, 0.0
    %vm639 = vcmp.gt.f32.partialorder %v636, 0.0
    %v640 = vmul.f32 %v634, 0.2
    %v641 = vmul.f32 %v636, 0.2
    %v642 = vsel %vm638, %v634, %v640
    %v643 = vsel %vm639, %v636, %v641
    %v644 = vld [vmem:[#allocation13] sm:$0xff]
    %v645 = vld [vmem:[#allocation13 + $0x8] sm:$0xff]
    %vm646 = vcmp.ge.u32.totalorder %v644, 1288490188
    %vm647 = vcmp.ge.u32.totalorder %v645, 1288490188
    %v648 = vsel %vm646, %v642, 0.0
    %v649 = vsel %vm647, %v643, 0.0
    %v650 = vld [vmem:[#allocation9] sm:$0xff]
    %v651 = vld [vmem:[#allocation9 + $0x8] sm:$0xff]
    %v652 = vld [vmem:[#allocation9 + $0x10] sm:$0xff]
    %v653 = vld [vmem:[#allocation9 + $0x18] sm:$0xff]
    %v654 = vld [vmem:[#allocation9 + $0x20] sm:$0xff]
    %v655 = vld [vmem:[#allocation9 + $0x28] sm:$0xff]
    %v656 = vld [vmem:[#allocation9 + $0x30] sm:$0xff]
    %v657 = vld [vmem:[#allocation9 + $0x38] sm:$0xff]
    %v658 = vld [vmem:[#allocation9 + $0x40] sm:$0xff]
    %v659 = vld [vmem:[#allocation9 + $0x48] sm:$0xff]
    %v660 = vld [vmem:[#allocation9 + $0x50] sm:$0xff]
    %v661 = vld [vmem:[#allocation9 + $0x58] sm:$0xff]
    %v662 = vld [vmem:[#allocation9 + $0x60] sm:$0xff]
    %v663 = vld [vmem:[#allocation9 + $0x68] sm:$0xff]
    %v664 = vld [vmem:[#allocation9 + $0x70] sm:$0xff]
    %v665 = vld [vmem:[#allocation9 + $0x78] sm:$0xff]
    %v666 = vld [vmem:[#allocation9 + $0x80] sm:$0xff]
    %v667 = vld [vmem:[#allocation9 + $0x88] sm:$0xff]
    %v668 = vld [vmem:[#allocation9 + $0x90] sm:$0xff]
    %v669 = vld [vmem:[#allocation9 + $0x98] sm:$0xff]
    %v670 = vld [vmem:[#allocation9 + $0xa0] sm:$0xff]
    %v671 = vld [vmem:[#allocation9 + $0xa8] sm:$0xff]
    %v672 = vld [vmem:[#allocation9 + $0xb0] sm:$0xff]
    %v673 = vld [vmem:[#allocation9 + $0xb8] sm:$0xff]
    %v674 = vld [vmem:[#allocation9 + $0xc0] sm:$0xff]
    %v675 = vld [vmem:[#allocation9 + $0xc8] sm:$0xff]
    %v676 = vld [vmem:[#allocation9 + $0xd0] sm:$0xff]
    %v677 = vld [vmem:[#allocation9 + $0xd8] sm:$0xff]
    %v678 = vld [vmem:[#allocation9 + $0xe0] sm:$0xff]
    %v679 = vld [vmem:[#allocation9 + $0xe8] sm:$0xff]
    %v680 = vld [vmem:[#allocation9 + $0xf0] sm:$0xff]
    %v681 = vld [vmem:[#allocation9 + $0xf8] sm:$0xff]
    %v682 = vld [vmem:[%s6] sm:$0x1]
    %v684 = vlaneseq
    %v685 = vshrl.u32 %v684, 7
    %v686 = vsub.s32 0, %v685
    %v687 = vrot.slane %v682, %v686
    %689 = vmatprep.subr.mxu0 0.0
    %690 = vmatpush1.msra.mxu0 %v650
    %691 = vmatprep.subr.mxu0 0.0
    %692 = vmatpush1.msra.mxu0 %v651
    %693 = vmatprep.subr.mxu0 0.0
    %694 = vmatpush1.msra.mxu0 %v652
    %695 = vmatprep.subr.mxu0 0.0
    %696 = vmatpush1.msra.mxu0 %v653
    %697 = vmatprep.subr.mxu0 0.0
    %698 = vmatpush1.msra.mxu0 %v654
    %699 = vmatprep.subr.mxu0 0.0
    %700 = vmatpush1.msra.mxu0 %v655
    %701 = vmatprep.subr.mxu0 0.0
    %702 = vmatpush1.msra.mxu0 %v656
    %703 = vmatprep.subr.mxu0 0.0
    %704 = vmatpush1.msra.mxu0 %v657
    %705 = vmatprep.subr.mxu0 0.0
    %706 = vmatpush1.msra.mxu0 %v658
    %707 = vmatprep.subr.mxu0 0.0
    %708 = vmatpush1.msra.mxu0 %v659
    %709 = vmatprep.subr.mxu0 0.0
    %710 = vmatpush1.msra.mxu0 %v660
    %711 = vmatprep.subr.mxu0 0.0
    %712 = vmatpush1.msra.mxu0 %v661
    %713 = vmatprep.subr.mxu0 0.0
    %714 = vmatpush1.msra.mxu0 %v662
    %715 = vmatprep.subr.mxu0 0.0
    %716 = vmatpush1.msra.mxu0 %v663
    %717 = vmatprep.subr.mxu0 0.0
    %718 = vmatpush1.msra.mxu0 %v664
    %719 = vmatprep.subr.mxu0 0.0
    %720 = vmatpush1.msra.mxu0 %v665
    %721 = vmatprep.subr.mxu0 0.0
    %722 = vmatpush1.msra.mxu0 %v666
    %723 = vmatprep.subr.mxu0 0.0
    %724 = vmatpush1.msra.mxu0 %v667
    %725 = vmatprep.subr.mxu0 0.0
    %726 = vmatpush1.msra.mxu0 %v668
    %727 = vmatprep.subr.mxu0 0.0
    %728 = vmatpush1.msra.mxu0 %v669
    %729 = vmatprep.subr.mxu0 0.0
    %730 = vmatpush1.msra.mxu0 %v670
    %731 = vmatprep.subr.mxu0 0.0
    %732 = vmatpush1.msra.mxu0 %v671
    %733 = vmatprep.subr.mxu0 0.0
    %734 = vmatpush1.msra.mxu0 %v672
    %735 = vmatprep.subr.mxu0 0.0
    %736 = vmatpush1.msra.mxu0 %v673
    %737 = vmatprep.subr.mxu0 0.0
    %738 = vmatpush1.msra.mxu0 %v674
    %739 = vmatprep.subr.mxu0 0.0
    %740 = vmatpush1.msra.mxu0 %v675
    %741 = vmatprep.subr.mxu0 0.0
    %742 = vmatpush1.msra.mxu0 %v676
    %743 = vmatprep.subr.mxu0 0.0
    %744 = vmatpush1.msra.mxu0 %v677
    %745 = vmatprep.subr.mxu0 0.0
    %746 = vmatpush1.msra.mxu0 %v678
    %747 = vmatprep.subr.mxu0 0.0
    %748 = vmatpush1.msra.mxu0 %v679
    %749 = vmatprep.subr.mxu0 0.0
    %750 = vmatpush1.msra.mxu0 %v680
    %751 = vmatprep.subr.mxu0 0.0
    %752 = vmatpush1.msra.mxu0 %v681
    %753 = vmatprep.mubr.f32.mxu0 %v649
    %754 = vmatmul.mubr.f32.gmra.mrb[0].mxu0 %v648
    %v755 = vpop.f32.mrb[0].mxu0
    %v756 = vadd.f32 %v687, %v755
    %v757 = vpop.f32.mrb[0].mxu0
    %758 = vdwg.mxu0
    %vm759 = vcmp.gt.f32.partialorder %v756, 0.0
    %v760 = vmul.f32 %v756, 0.2
    %v761 = vsel %vm759, %v756, %v760
    %v762 = vld [vmem:[%s13] sm:$0xff]
    %vm763 = vcmp.ge.u32.totalorder %v762, 1288490188
    %v764 = vsel %vm763, %v761, 0.0
    %v765 = vld [vmem:[%s7] sm:$0xff]
    %v766 = vld [vmem:[%s7 + $0x8] sm:$0xff]
    %v767 = vld [vmem:[%s7 + $0x10] sm:$0xff]
    %v768 = vld [vmem:[%s7 + $0x18] sm:$0xff]
    %v769 = vld [vmem:[%s7 + $0x20] sm:$0xff]
    %v770 = vld [vmem:[%s7 + $0x28] sm:$0xff]
    %v771 = vld [vmem:[%s7 + $0x30] sm:$0xff]
    %v772 = vld [vmem:[%s7 + $0x38] sm:$0xff]
    %v773 = vld [vmem:[%s7 + $0x40] sm:$0xff]
    %v774 = vld [vmem:[%s7 + $0x48] sm:$0xff]
    %v775 = vld [vmem:[%s7 + $0x50] sm:$0xff]
    %v776 = vld [vmem:[%s7 + $0x58] sm:$0xff]
    %v777 = vld [vmem:[%s7 + $0x60] sm:$0xff]
    %v778 = vld [vmem:[%s7 + $0x68] sm:$0xff]
    %v779 = vld [vmem:[%s7 + $0x70] sm:$0xff]
    %v780 = vld [vmem:[%s7 + $0x78] sm:$0xff]
    %v781 = vld [vmem:[#allocation10] sm:$0x1]
    %v783 = vlaneseq
    %v784 = vshrl.u32 %v783, 7
    %v785 = vsub.s32 0, %v784
    %v786 = vrot.slane %v781, %v785
    %788 = vmatprep.subr.mxu0 0.0
    %789 = vmatpush1.msra.mxu0 %v765
    %790 = vmatprep.subr.mxu0 0.0
    %791 = vmatpush1.msra.mxu0 %v766
    %792 = vmatprep.subr.mxu0 0.0
    %793 = vmatpush1.msra.mxu0 %v767
    %794 = vmatprep.subr.mxu0 0.0
    %795 = vmatpush1.msra.mxu0 %v768
    %796 = vmatprep.subr.mxu0 0.0
    %797 = vmatpush1.msra.mxu0 %v769
    %798 = vmatprep.subr.mxu0 0.0
    %799 = vmatpush1.msra.mxu0 %v770
    %800 = vmatprep.subr.mxu0 0.0
    %801 = vmatpush1.msra.mxu0 %v771
    %802 = vmatprep.subr.mxu0 0.0
    %803 = vmatpush1.msra.mxu0 %v772
    %804 = vmatprep.subr.mxu0 0.0
    %805 = vmatpush1.msra.mxu0 %v773
    %806 = vmatprep.subr.mxu0 0.0
    %807 = vmatpush1.msra.mxu0 %v774
    %808 = vmatprep.subr.mxu0 0.0
    %809 = vmatpush1.msra.mxu0 %v775
    %810 = vmatprep.subr.mxu0 0.0
    %811 = vmatpush1.msra.mxu0 %v776
    %812 = vmatprep.subr.mxu0 0.0
    %813 = vmatpush1.msra.mxu0 %v777
    %814 = vmatprep.subr.mxu0 0.0
    %815 = vmatpush1.msra.mxu0 %v778
    %816 = vmatprep.subr.mxu0 0.0
    %817 = vmatpush1.msra.mxu0 %v779
    %818 = vmatprep.subr.mxu0 0.0
    %819 = vmatpush1.msra.mxu0 %v780
    %820 = vmatprep.subr.mxu0 0.0
    %821 = vmatpush1.msra.mxu0 0.0
    %822 = vmatprep.subr.mxu0 0.0
    %823 = vmatpush1.msra.mxu0 0.0
    %824 = vmatprep.subr.mxu0 0.0
    %825 = vmatpush1.msra.mxu0 0.0
    %826 = vmatprep.subr.mxu0 0.0
    %827 = vmatpush1.msra.mxu0 0.0
    %828 = vmatprep.subr.mxu0 0.0
    %829 = vmatpush1.msra.mxu0 0.0
    %830 = vmatprep.subr.mxu0 0.0
    %831 = vmatpush1.msra.mxu0 0.0
    %832 = vmatprep.subr.mxu0 0.0
    %833 = vmatpush1.msra.mxu0 0.0
    %834 = vmatprep.subr.mxu0 0.0
    %835 = vmatpush1.msra.mxu0 0.0
    %836 = vmatprep.subr.mxu0 0.0
    %837 = vmatpush1.msra.mxu0 0.0
    %838 = vmatprep.subr.mxu0 0.0
    %839 = vmatpush1.msra.mxu0 0.0
    %840 = vmatprep.subr.mxu0 0.0
    %841 = vmatpush1.msra.mxu0 0.0
    %842 = vmatprep.subr.mxu0 0.0
    %843 = vmatpush1.msra.mxu0 0.0
    %844 = vmatprep.subr.mxu0 0.0
    %845 = vmatpush1.msra.mxu0 0.0
    %846 = vmatprep.subr.mxu0 0.0
    %847 = vmatpush1.msra.mxu0 0.0
    %848 = vmatprep.subr.mxu0 0.0
    %849 = vmatpush1.msra.mxu0 0.0
    %850 = vmatprep.subr.mxu0 0.0
    %851 = vmatpush1.msra.mxu0 0.0
    %852 = vmatprep.mubr.f32.mxu0 0.0
    %853 = vmatmul.mubr.f32.gmra.mrb[0].mxu0 %v764
    %v854 = vpop.f32.mrb[0].mxu0
    %v855 = vadd.f32 %v786, %v854
    %v856 = vpop.f32.mrb[0].mxu0
    %857 = vdwg.mxu0
    %vm858 = vcmp.gt.f32.partialorder %v855, 0.0
    %v859 = vmul.f32 %v855, 0.2
    %v860 = vsel %vm858, %v855, %v859
    %v861 = vld [vmem:[%s14] sm:$0xff]
    %vm862 = vcmp.ge.u32.totalorder %v861, 1288490188
    %v863 = vsel %vm862, %v860, 0.0
    %v864 = vld [vmem:[%s9] sm:$0xff]
    %v865 = vld [vmem:[%s9 + $0x8] sm:$0xff]
    %v866 = vld [vmem:[%s9 + $0x10] sm:$0xff]
    %v867 = vld [vmem:[%s9 + $0x18] sm:$0xff]
    %v868 = vld [vmem:[%s9 + $0x20] sm:$0xff]
    %v869 = vld [vmem:[%s9 + $0x28] sm:$0xff]
    %v870 = vld [vmem:[%s9 + $0x30] sm:$0xff]
    %v871 = vld [vmem:[%s9 + $0x38] sm:$0xff]
    %v872 = vld [vmem:[#allocation12] sm:$0x1]
    %v874 = vlaneseq
    %v875 = vshrl.u32 %v874, 7
    %v876 = vsub.s32 0, %v875
    %v877 = vrot.slane %v872, %v876
    %vm879 = vcmask 523264
    %v881 = vsel %vm879, %v863, 0
    %883 = vmatprep.subr.mxu0 0.0
    %884 = vmatpush1.msra.mxu0 %v864
    %885 = vmatprep.subr.mxu0 0.0
    %886 = vmatpush1.msra.mxu0 %v865
    %887 = vmatprep.subr.mxu0 0.0
    %888 = vmatpush1.msra.mxu0 %v866
    %889 = vmatprep.subr.mxu0 0.0
    %890 = vmatpush1.msra.mxu0 %v867
    %891 = vmatprep.subr.mxu0 0.0
    %892 = vmatpush1.msra.mxu0 %v868
    %893 = vmatprep.subr.mxu0 0.0
    %894 = vmatpush1.msra.mxu0 %v869
    %895 = vmatprep.subr.mxu0 0.0
    %896 = vmatpush1.msra.mxu0 %v870
    %897 = vmatprep.subr.mxu0 0.0
    %898 = vmatpush1.msra.mxu0 %v871
    %899 = vmatprep.subr.mxu0 0.0
    %900 = vmatpush1.msra.mxu0 0.0
    %901 = vmatprep.subr.mxu0 0.0
    %902 = vmatpush1.msra.mxu0 0.0
    %903 = vmatprep.subr.mxu0 0.0
    %904 = vmatpush1.msra.mxu0 0.0
    %905 = vmatprep.subr.mxu0 0.0
    %906 = vmatpush1.msra.mxu0 0.0
    %907 = vmatprep.subr.mxu0 0.0
    %908 = vmatpush1.msra.mxu0 0.0
    %909 = vmatprep.subr.mxu0 0.0
    %910 = vmatpush1.msra.mxu0 0.0
    %911 = vmatprep.subr.mxu0 0.0
    %912 = vmatpush1.msra.mxu0 0.0
    %913 = vmatprep.subr.mxu0 0.0
    %914 = vmatpush1.msra.mxu0 0.0
    %915 = vmatprep.subr.mxu0 0.0
    %916 = vmatpush1.msra.mxu0 0.0
    %917 = vmatprep.subr.mxu0 0.0
    %918 = vmatpush1.msra.mxu0 0.0
    %919 = vmatprep.subr.mxu0 0.0
    %920 = vmatpush1.msra.mxu0 0.0
    %921 = vmatprep.subr.mxu0 0.0
    %922 = vmatpush1.msra.mxu0 0.0
    %923 = vmatprep.subr.mxu0 0.0
    %924 = vmatpush1.msra.mxu0 0.0
    %925 = vmatprep.subr.mxu0 0.0
    %926 = vmatpush1.msra.mxu0 0.0
    %927 = vmatprep.subr.mxu0 0.0
    %928 = vmatpush1.msra.mxu0 0.0
    %929 = vmatprep.subr.mxu0 0.0
    %930 = vmatpush1.msra.mxu0 0.0
    %931 = vmatprep.subr.mxu0 0.0
    %932 = vmatpush1.msra.mxu0 0.0
    %933 = vmatprep.subr.mxu0 0.0
    %934 = vmatpush1.msra.mxu0 0.0
    %935 = vmatprep.subr.mxu0 0.0
    %936 = vmatpush1.msra.mxu0 0.0
    %937 = vmatprep.subr.mxu0 0.0
    %938 = vmatpush1.msra.mxu0 0.0
    %939 = vmatprep.subr.mxu0 0.0
    %940 = vmatpush1.msra.mxu0 0.0
    %941 = vmatprep.subr.mxu0 0.0
    %942 = vmatpush1.msra.mxu0 0.0
    %943 = vmatprep.subr.mxu0 0.0
    %944 = vmatpush1.msra.mxu0 0.0
    %945 = vmatprep.subr.mxu0 0.0
    %946 = vmatpush1.msra.mxu0 0.0
    %947 = vmatprep.mubr.f32.mxu0 0.0
    %948 = vmatmul.mubr.f32.gmra.mrb[0].mxu0 %v881
    %v949 = vpop.f32.mrb[0].mxu0
    %v950 = vadd.f32 %v877, %v949
    %v951 = vpop.f32.mrb[0].mxu0
    %952 = vdwg.mxu0
    %v953 = vxor.u32 %v950, 2147483648
    %v954 = vmul.f32 %v953, 1.442695
    %v955 = vpow.pop %v954
    %v956 = vadd.f32 %v955, 1.0
    %v957 = vrcp.pop %v956
    %v958 = vmul.f32 1.0, %v957
    %960 = vrot.lane.b32.xlu0 %v958, 64
    %v961 = vpop.permute.xlu0 %960
    %v963 = vsel %vm879, %v860, %v961
    %964 = vst [vmem:[%s15] sm:$0xff] %v963
    // Predicated region
    $region94: #{_disc_call.1} parent=1 // pred_check
      _
    $region95: #{_disc_call.1} parent=1 // pred_check_branch
      %966 = sbr.rel (0) target = $region97
    $region96: #{_disc_call.1} parent=1 // pred_region
      _
    $region97: #{_disc_call.1} parent=1 // pred_fallthru
      _
    // Predicated region
    $region98: #{_disc_call.1} parent=1 // pred_check
      _
    $region99: #{_disc_call.1} parent=1 // pred_check_branch
      %968 = sbr.rel (0) target = $region101
    $region100: #{_disc_call.1} parent=1 // pred_region
      _
    $region101: #{_disc_call.1} parent=1 // pred_fallthru
      _
    %969 = vsyncpa [#allocation3], 1
    %970 = vsyncpa [#allocation5], 1
    %971 = vsyncpa [#allocation8], 1
    %972 = vsyncpa [#allocation11], 1
    %973 = vsyncpa [#allocation14], 1

</llo_original>
